<compile_context>
chip_gen: v5e
topology: v5e:2x2
jax: 0.10.0
libtpu: 0.0.40
codegen_flags: <defaults>
</compile_context>

<pallas_src>
import functools

import numpy as np
import jax
import jax.numpy as jnp
from jax import lax
from jax.experimental import pallas as pl
from jax.experimental.pallas import tpu as pltpu

_F32 = jnp.float32
_N_PAR = 2   # leading "parallel" grid axis (both v7x TensorCores; no-op on 1-TC chips)


def _round_up(n, m):
    return ((n + m - 1) // m) * m


def _ceil_div(a, b):
    return -(-a // b)


# ----------------------- generation-aware VMEM budgeting ----------------------

def _vmem_capacity_bytes():
    try:
        info = pltpu.get_tpu_info()
        for attr in ("vmem_capacity_bytes", "vmem_size_bytes", "vmem_bytes"):
            v = getattr(info, attr, None)
            if v and int(v) >= (16 << 20):      # sanity: must look like bytes
                return int(v)
    except Exception:
        pass
    return 64 << 20                              # conservative fallback (v7x physical)


def _mosaic_params(need_bytes, semantics):
    # ~3/4 of physical VMEM (~48 MiB v7x, ~96 MiB v5e/v6e); need_bytes already
    # counts double-buffering of every tiled block plus in-kernel temporaries.
    budget = (_vmem_capacity_bytes() * 3) // 4
    limit = int(min(budget, max(2 * int(need_bytes) + (4 << 20), 32 << 20)))
    return pltpu.CompilerParams(dimension_semantics=semantics,
                                vmem_limit_bytes=limit)


# --------------------- fused student matmul + MAE kernel ----------------------

def _student_mae_kernel(wn_ref, b_ref, noise_ref, melc_ref, ref_ref,
                        pred_ref, mae_ref, *, nt, n_valid):
    p = pl.program_id(0)
    j = pl.program_id(1)
    nblk = pl.num_programs(1)

    @pl.when(j == 0)
    def _init():
        mae_ref[...] = jnp.zeros_like(mae_ref)

    # student 1x1 conv: only the G noise channels need the full-rate matmul;
    # the mel contribution was applied before upsampling and streams in
    # precomputed (conv(repeat(mel)) == repeat(conv(mel))).
    pred = (jnp.dot(wn_ref[...], noise_ref[...], preferred_element_type=jnp.float32)
            + melc_ref[...] + b_ref[...])
    pred_ref[...] = pred.astype(pred_ref.dtype)

    err = jnp.abs(pred - ref_ref[...])
    col0 = (p * nblk + j) * nt

    @pl.when(col0 + nt <= n_valid)           # interior tile: no masking work
    def _full():
        mae_ref[...] += jnp.sum(err)

    @pl.when(col0 + nt > n_valid)            # tail tile: mask padded columns
    def _tail():
        col = col0 + lax.broadcasted_iota(jnp.int32, err.shape, 1)
        mae_ref[...] += jnp.sum(err * (col < n_valid).astype(jnp.float32))


def student_predict_and_mae(noise_gn, melc_gn, ref_gn, w_noise, b, *, col_tile=4096):
    """All inputs channels-first [G, N] (N = B*T on the lane axis).
    Returns (lane-dense padded prediction [G, n_pad], n_pad, scalar MAE)."""
    G, N = noise_gn.shape
    nt = min(int(col_tile), _round_up(_ceil_div(N, _N_PAR), 128))
    n_pad = _round_up(N, _N_PAR * nt)
    nblk = n_pad // (_N_PAR * nt)
    pad = ((0, 0), (0, n_pad - N))
    noise_p = jnp.pad(noise_gn, pad)
    melc_p = jnp.pad(melc_gn, pad)
    ref_p = jnp.pad(ref_gn, pad)

    col_map = lambda p, j: (0, p * nblk + j)
    need = 4 * (2 * (G * G + G + 3 * G * nt)     # double-buffered tiled inputs
                + 2 * (G * nt + 1)               # double-buffered outputs
                + 4 * G * nt)                    # in-kernel temporaries

    pred_p, mae_part = pl.pallas_call(
        functools.partial(_student_mae_kernel, nt=nt, n_valid=N),
        grid=(_N_PAR, nblk),
        in_specs=[
            pl.BlockSpec((G, G), lambda p, j: (0, 0)),      # resident conv weights
            pl.BlockSpec((G, 1), lambda p, j: (0, 0)),      # resident bias
            pl.BlockSpec((G, nt), col_map),                 # streamed noise
            pl.BlockSpec((G, nt), col_map),                 # streamed mel contribution
            pl.BlockSpec((G, nt), col_map),                 # streamed reference
        ],
        out_specs=(
            pl.BlockSpec((G, nt), col_map),                 # lane-dense prediction
            pl.BlockSpec((1, 1, 1), lambda p, j: (p, 0, 0)),  # per-core MAE partial
        ),
        out_shape=(jax.ShapeDtypeStruct((G, n_pad), _F32),
                   jax.ShapeDtypeStruct((_N_PAR, 1, 1), _F32)),
        compiler_params=_mosaic_params(need, ("parallel", "arbitrary")),
    )(w_noise, b.reshape(G, 1), noise_p, melc_p, ref_p)

    # NOTE: padded columns of pred_p hold bias values; downstream STFT framing
    # only gathers valid (t < T) columns, so they are never read.
    return pred_p, n_pad, jnp.sum(mae_part) / jnp.float32(G * N)


# ----------------------- multi-resolution STFT kernel -------------------------

def _stft_kernel(xf_ref, yf_ref, crci_ref, num_ref, den_ref, log_ref,
                 *, tf, nbp, n_frames):
    p = pl.program_id(0)
    j = pl.program_id(1)
    nblk = pl.num_programs(1)

    @pl.when(j == 0)
    def _init():
        num_ref[...] = jnp.zeros_like(num_ref)
        den_ref[...] = jnp.zeros_like(den_ref)
        log_ref[...] = jnp.zeros_like(log_ref)

    # single windowed-DFT matmul per signal (real || imag side by side)
    xs = jnp.dot(xf_ref[...], crci_ref[...], preferred_element_type=jnp.float32)
    ys = jnp.dot(yf_ref[...], crci_ref[...], preferred_element_type=jnp.float32)
    xr, xi = xs[:, :nbp], xs[:, nbp:]
    yr, yi = ys[:, :nbp], ys[:, nbp:]
    # ParallelWaveGAN stft(): magnitude = sqrt(clamp(re^2 + im^2, min=1e-7))
    x_sq = jnp.maximum(xr * xr + xi * xi, 1e-7)
    y_sq = jnp.maximum(yr * yr + yi * yi, 1e-7)

    # (y_mag - x_mag)^2 = x_sq + y_sq - 2*sqrt(x_sq*y_sq): one EUP sqrt, not two
    d2 = x_sq + y_sq - 2.0 * jnp.sqrt(x_sq * y_sq)
    # |log y_mag - log x_mag| = 0.5 * |log y_sq - log x_sq|
    ld = jnp.abs(jnp.log(y_sq) - jnp.log(x_sq))

    row0 = (p * nblk + j) * tf

    @pl.when(row0 + tf <= n_frames)          # interior tile: no masking work
    def _full():
        num_ref[...] += jnp.sum(d2)
        den_ref[...] += jnp.sum(y_sq)
        log_ref[...] += 0.5 * jnp.sum(ld)

    @pl.when(row0 + tf > n_frames)           # tail tile: mask rows beyond F
    def _tail():
        m = ((row0 + lax.broadcasted_iota(jnp.int32, d2.shape, 0)) < n_frames
             ).astype(jnp.float32)
        num_ref[...] += jnp.sum(d2 * m)
        den_ref[...] += jnp.sum(y_sq * m)
        log_ref[...] += 0.5 * jnp.sum(ld * m)


def stft_losses(xf, yf, crci, *, n_frames, nb, nbp, tf):
    """xf/yf: un-windowed frames [f_pad, n_fft] (f_pad a multiple of _N_PAR*tf);
    crci: window-folded DFT operand [n_fft, 2*nbp]. Returns (sc_loss, mag_loss)."""
    f_pad, n_fft = xf.shape
    nblk = f_pad // (_N_PAR * tf)
    row_map = lambda p, j: (p * nblk + j, 0)
    acc_map = lambda p, j: (p, 0, 0)

    esz = jnp.dtype(xf.dtype).itemsize
    need = (2 * esz * (2 * tf * n_fft + 2 * n_fft * nbp)   # double-buffered inputs
            + 4 * (6 + 10 * tf * nbp))                     # outputs + f32 temporaries

    num, den, log_ = pl.pallas_call(
        functools.partial(_stft_kernel, tf=tf, nbp=nbp, n_frames=n_frames),
        grid=(_N_PAR, nblk),
        in_specs=[
            pl.BlockSpec((tf, n_fft), row_map),
            pl.BlockSpec((tf, n_fft), row_map),
            pl.BlockSpec((n_fft, 2 * nbp), lambda p, j: (0, 0)),   # resident DFT op
        ],
        out_specs=(pl.BlockSpec((1, 1, 1), acc_map),) * 3,
        out_shape=(jax.ShapeDtypeStruct((_N_PAR, 1, 1), _F32),) * 3,
        compiler_params=_mosaic_params(need, ("parallel", "arbitrary")),
    )(xf, yf, crci)

    num_s = jnp.sum(num)
    den_s = jnp.sum(den)
    log_s = jnp.sum(log_)
    # zero-padded DFT bins contribute exactly clamp(0, 1e-7) = 1e-7 each to den
    den_s = den_s - jnp.float32(1e-7) * jnp.float32((nbp - nb) * n_frames)
    sc = jnp.sqrt(num_s / den_s)                  # ||y - x||_F / ||y||_F
    mag = log_s / jnp.float32(n_frames * nb)      # mean |log y_mag - log x_mag|
    return sc, mag


# ------------------------------- glue (host/JAX) ------------------------------

def _hann_window(win_length, n_fft):
    # torch.hann_window default (periodic), zero-padded (centered) to n_fft,
    # exactly as torch.stft does when win_length < n_fft.
    n = np.arange(win_length)
    w = 0.5 - 0.5 * np.cos(2.0 * np.pi * n / win_length)
    lp = (n_fft - win_length) // 2
    return np.pad(w, (lp, n_fft - win_length - lp))


def _windowed_dft_operand(n_fft, win_length, dtype):
    """[n_fft, 2*nbp] operand: window-scaled cos | -sin one-sided DFT bases side
    by side; real / imag halves each lane-padded to a multiple of 128."""
    nb = n_fft // 2 + 1
    nbp = _round_up(nb, 128)
    n = np.arange(n_fft)[:, None]
    k = np.arange(nb)[None, :]
    ang = 2.0 * np.pi * n * k / n_fft
    w = _hann_window(win_length, n_fft)[:, None]
    crci = np.zeros((n_fft, 2 * nbp), np.float32)
    crci[:, :nb] = (w * np.cos(ang)).astype(np.float32)
    crci[:, nbp:nbp + nb] = (w * -np.sin(ang)).astype(np.float32)
    return jnp.asarray(crci, dtype=dtype), nb, nbp


def _frame_indices(B, T, G, n_fft, hop):
    """torch.stft(center=True, pad_mode='reflect') frame indices of the
    interleaved waveform wave[b, s] = x[g = s % G, b*T + s // G], returned as
    (g, b*T + t) so frames gather straight from the [G, B*T] layout
    (reflect padding + G-interleave folded into index math, no transposes)."""
    Tw = T * G
    pad = n_fft // 2
    n_frames_b = 1 + (Tw + 2 * pad - n_fft) // hop
    p = np.arange(n_frames_b)[:, None] * hop + np.arange(n_fft)[None, :] - pad
    s = np.abs(p)                                  # reflect at the left edge
    s = np.where(s >= Tw, 2 * Tw - 2 - s, s)       # reflect at the right edge
    g = np.broadcast_to((s % G)[None], (B, n_frames_b, n_fft))
    bt = np.arange(B)[:, None, None] * T + (s // G)[None]
    F = B * n_frames_b
    return g.reshape(F, n_fft), bt.reshape(F, n_fft), F


class DistillationLossPallas:
    """JAX/Pallas port of DistillationLoss.forward.

    forward(mel [B, num_mels, L], sigma) -> (loss_full, loss_mae, loss_stft)
    """

    def __init__(self, *, stft_loss_coeff, hop_length, win_length, num_mels,
                 n_group=2, n_fft=None, sample_rate=22050, min_frequency=0.0,
                 max_frequency=8000.0, eps=1e-5, key=None,
                 stft_resolutions=((32, 8, 24), (64, 16, 48), (16, 4, 12)),
                 col_tile=4096, frame_tile=1024, stft_matmul_dtype=jnp.float32):
        # NOTE: MultiResolutionSTFTLoss defaults are fft=[1024,2048,512],
        # hop=[120,240,50], win=[600,1200,240]; scaled down so the small
        # synthetic waveform still yields several frames per resolution.
        self.teacher_dtype = _F32
        self.stft_loss_coeff = float(stft_loss_coeff)
        self.n_fft = n_fft if n_fft is not None else win_length
        self.hop_length, self.win_length, self.num_mels = hop_length, win_length, num_mels
        self.sample_rate = sample_rate
        self.min_frequency, self.max_frequency = min_frequency, max_frequency
        self.eps = eps
        self.n_group = n_group
        self.col_tile = int(col_tile)
        self.frame_tile = int(frame_tile)
        # bf16 DFT operands halve HBM/VMEM residency and run the MXU at full
        # rate on v6e/v7x; default stays f32 until validated vs. the reference.
        self.stft_matmul_dtype = stft_matmul_dtype

        if key is None:
            key = jax.random.PRNGKey(0)
        k0, k1, k2, k3 = jax.random.split(key, 4)
        c_in = n_group + num_mels
        # deterministic synthetic parameters (stand-ins for student / teacher nets)
        wT = 0.1 * jax.random.normal(k0, (n_group, c_in), _F32)   # student [G, C]
        self.w_noise = wT[:, :n_group]            # conv weights on noise channels
        self.w_mel = wT[:, n_group:]              # conv weights on mel channels
        self.student_b = 0.01 * jax.random.normal(k1, (n_group,), _F32)
        self.teacher_w = 0.1 * jax.random.normal(k2, (num_mels, n_group), _F32)
        self.noise_key = k3   # fixed key -> deterministic "sampled" noise stand-in

        # per-resolution window-folded DFT operands
        self.stft_cfgs = []
        for (nf, hop, win) in stft_resolutions:
            crci, nb, nbp = _windowed_dft_operand(nf, win, self.stft_matmul_dtype)
            self.stft_cfgs.append((nf, hop, crci, nb, nbp))

    # --------------------------------- forward --------------------------------
    def __call__(self, mel, sigma=1.0):
        mel_f = mel.astype(_F32)
        B, _, L = mel_f.shape
        G = self.n_group
        hop_up = self.hop_length
        T = L * hop_up
        N = B * T

        # ----- torch.no_grad() block: sampled noise + frozen teacher -----
        # Channels-first [G, B*T] layouts from the start; teacher projection
        # and tanh applied at mel rate then upsampled (pointwise, so identical).
        noise_gn = lax.stop_gradient(
            sigma * jax.random.normal(self.noise_key, (G, N), _F32))
        proj = jnp.einsum("bml,mg->gbl", mel_f, self.teacher_w)
        tanh_up = jnp.repeat(jnp.tanh(proj), hop_up, axis=2).reshape(G, N)
        ref_gn = lax.stop_gradient(tanh_up + 0.1 * noise_gn)

        # Student 1x1-conv mel contribution applied BEFORE upsampling:
        # conv(repeat(mel)) == repeat(conv(mel)); only G-channel streams at full T.
        melc_up = jnp.repeat(jnp.einsum("gm,bml->gbl", self.w_mel, mel_f),
                             hop_up, axis=2).reshape(G, N)

        pred_p, n_pad, loss_mae = student_predict_and_mae(
            noise_gn, melc_up, ref_gn, self.w_noise, self.student_b,
            col_tile=self.col_tile)

        # ----- multi-resolution STFT loss -----
        # TODO(synk): move framing (reflect pad + hop-strided windows) into the
        # STFT kernel with a resident waveform to remove this XLA gather.
        pred_flat = pred_p.reshape(-1)      # [G, n_pad] row-major (stride n_pad)
        ref_flat = ref_gn.reshape(-1)       # [G, N]     row-major (stride N)
        mx = self.stft_matmul_dtype
        sc_total = jnp.float32(0.0)
        mag_total = jnp.float32(0.0)
        for (n_fft, hop, crci, nb, nbp) in self.stft_cfgs:
            g_idx, bt_idx, F = _frame_indices(B, T, G, n_fft, hop)
            tf = min(self.frame_tile, _round_up(_ceil_div(F, _N_PAR), 8))
            f_pad = _round_up(F, _N_PAR * tf)
            gp = np.zeros((f_pad, n_fft), np.int64)
            btp = np.zeros((f_pad, n_fft), np.int64)
            gp[:F], btp[:F] = g_idx, bt_idx      # padded rows read idx 0 (masked)
            xf = pred_flat[jnp.asarray((gp * n_pad + btp).astype(np.int32))]
            yf = ref_flat[jnp.asarray((gp * N + btp).astype(np.int32))]
            sc, mag = stft_losses(xf.astype(mx), yf.astype(mx), crci,
                                  n_frames=F, nb=nb, nbp=nbp, tf=tf)
            sc_total = sc_total + sc
            mag_total = mag_total + mag

        n_res = len(self.stft_cfgs)
        loss_stft = (sc_total + mag_total) / n_res
        loss_full = (loss_mae + loss_stft * self.stft_loss_coeff
                     if self.stft_loss_coeff else loss_mae)
        return loss_full, loss_mae, loss_stft


if __name__ == "__main__":
    key = jax.random.PRNGKey(0)
    k_mel, k_params = jax.random.split(key)

    # small synthetic shapes: batch=2, num_mels=8, mel length=40,
    # hop_length (mel->audio upsampling)=16, n_group=2 -> waveform [2, 1280];
    # exercises multi-block grids, parallel-axis partials and tail masks.
    B, num_mels, L_mel = 2, 8, 40
    mel = jax.random.normal(k_mel, (B, num_mels, L_mel), jnp.float32)

    loss_mod = DistillationLossPallas(
        stft_loss_coeff=1.0,
        hop_length=16,
        win_length=32,
        num_mels=num_mels,
        n_group=2,
        key=k_params,
    )

    loss_full, loss_mae, loss_stft = loss_mod(mel, sigma=1.0)
    jax.block_until_ready((loss_full, loss_mae, loss_stft))
    assert np.isfinite(float(loss_full))
    assert np.isfinite(float(loss_mae))
    assert np.isfinite(float(loss_stft))
    print("KERNEL_OK")
</pallas_src>

<mosaic_0001>
module attributes {stable_mosaic.version = 11 : i64} {
  func.func @_student_mae_kernel(%arg0: i32, %arg1: i32, %arg2: memref<2x2xf32, #tpu.memory_space<vmem>>, %arg3: memref<2x1xf32, #tpu.memory_space<vmem>>, %arg4: memref<2x640xf32, #tpu.memory_space<vmem>>, %arg5: memref<2x640xf32, #tpu.memory_space<vmem>>, %arg6: memref<2x640xf32, #tpu.memory_space<vmem>>, %arg7: memref<2x640xf32, #tpu.memory_space<vmem>>, %arg8: memref<1x1x1xf32, #tpu.memory_space<vmem>>) attributes {dimension_semantics = [#tpu.dimension_semantics<parallel>, #tpu.dimension_semantics<arbitrary>], iteration_bounds = array<i64: 2, 1>, scalar_prefetch = 0 : i64, scratch_operands = 0 : i64, tpu.core_type = #tpu.core_type<tc>, window_params = [{pipeline_mode = #tpu.pipeline_mode<synchronous>, transform_indices = @transform_0, window_bounds = array<i64: 2, 2>}, {pipeline_mode = #tpu.pipeline_mode<synchronous>, transform_indices = @transform_1, window_bounds = array<i64: 2, 1>}, {transform_indices = @transform_2, window_bounds = array<i64: 2, 640>}, {transform_indices = @transform_3, window_bounds = array<i64: 2, 640>}, {transform_indices = @transform_4, window_bounds = array<i64: 2, 640>}, {transform_indices = @transform_5, window_bounds = array<i64: 2, 640>}, {transform_indices = @transform_6, window_bounds = array<i64: 1, 1, 1>}]} {
    %c0_i32 = arith.constant 0 : i32
    %0 = arith.cmpi eq, %arg1, %c0_i32 : i32
    %1 = arith.extui %0 : i1 to i32
    %c0_i32_0 = arith.constant 0 : i32
    %2 = arith.cmpi ne, %1, %c0_i32_0 : i32
    scf.if %2 {
      %cst_17 = arith.constant 0.000000e+00 : f32
      %26 = vector.broadcast %cst_17 : f32 to vector<1x1x1xf32>
      %c0_18 = arith.constant 0 : index
      %c0_19 = arith.constant 0 : index
      %c0_20 = arith.constant 0 : index
      %27 = vector.load %arg8[%c0_18, %c0_19, %c0_20] : memref<1x1x1xf32, #tpu.memory_space<vmem>>, vector<1x1x1xf32>
      tpu.vector_store %arg8[%c0_18, %c0_19, %c0_20], %26 {strides = array<i32>} : memref<1x1x1xf32, #tpu.memory_space<vmem>>, vector<1x1x1xf32>,
    } else {
    }
    %c0 = arith.constant 0 : index
    %c0_1 = arith.constant 0 : index
    %3 = vector.load %arg2[%c0, %c0_1] : memref<2x2xf32, #tpu.memory_space<vmem>>, vector<2x2xf32>
    %c0_2 = arith.constant 0 : index
    %c0_3 = arith.constant 0 : index
    %4 = vector.load %arg4[%c0_2, %c0_3] : memref<2x640xf32, #tpu.memory_space<vmem>>, vector<2x640xf32>
    %cst = arith.constant dense<0.000000e+00> : vector<2x640xf32>
    %5 = tpu.matmul %3, %4, %cst {dimension_numbers = #tpu.dot_dimension_numbers<[1], [0], [0], [1], [0, 0, 1, 1], [], []>} : vector<2x2xf32>, vector<2x640xf32>, vector<2x640xf32> -> vector<2x640xf32>
    %c0_4 = arith.constant 0 : index
    %c0_5 = arith.constant 0 : index
    %6 = vector.load %arg5[%c0_4, %c0_5] : memref<2x640xf32, #tpu.memory_space<vmem>>, vector<2x640xf32>
    %7 = arith.addf %5, %6 : vector<2x640xf32>
    %c0_6 = arith.constant 0 : index
    %c0_7 = arith.constant 0 : index
    %8 = vector.load %arg3[%c0_6, %c0_7] : memref<2x1xf32, #tpu.memory_space<vmem>>, vector<2x1xf32>
    %9 = vector.broadcast %8 : vector<2x1xf32> to vector<2x640xf32>
    %10 = arith.addf %7, %9 : vector<2x640xf32>
    %c0_8 = arith.constant 0 : index
    %c0_9 = arith.constant 0 : index
    %11 = vector.load %arg7[%c0_8, %c0_9] : memref<2x640xf32, #tpu.memory_space<vmem>>, vector<2x640xf32>
    tpu.vector_store %arg7[%c0_8, %c0_9], %10 {strides = array<i32>} : memref<2x640xf32, #tpu.memory_space<vmem>>, vector<2x640xf32>,
    %c0_10 = arith.constant 0 : index
    %c0_11 = arith.constant 0 : index
    %12 = vector.load %arg6[%c0_10, %c0_11] : memref<2x640xf32, #tpu.memory_space<vmem>>, vector<2x640xf32>
    %13 = arith.subf %10, %12 : vector<2x640xf32>
    %14 = math.absf %13 : vector<2x640xf32>
    %c1_i32 = arith.constant 1 : i32
    %15 = arith.muli %arg0, %c1_i32 : i32
    %16 = arith.addi %15, %arg1 : i32
    %c640_i32 = arith.constant 640 : i32
    %17 = arith.muli %16, %c640_i32 : i32
    %c640_i32_12 = arith.constant 640 : i32
    %18 = arith.addi %17, %c640_i32_12 : i32
    %c1280_i32 = arith.constant 1280 : i32
    %19 = arith.cmpi sle, %18, %c1280_i32 : i32
    %20 = arith.extui %19 : i1 to i32
    %c0_i32_13 = arith.constant 0 : i32
    %21 = arith.cmpi ne, %20, %c0_i32_13 : i32
    scf.if %21 {
      %c0_17 = arith.constant 0 : index
      %c0_18 = arith.constant 0 : index
      %c0_19 = arith.constant 0 : index
      %26 = vector.load %arg8[%c0_17, %c0_18, %c0_19] : memref<1x1x1xf32, #tpu.memory_space<vmem>>, vector<1x1x1xf32>
      %27 = vector.shape_cast %14 : vector<2x640xf32> to vector<1x2x640xf32>
      %cst_20 = arith.constant dense<0.000000e+00> : vector<1xf32>
      %28 = vector.multi_reduction <add>, %27, %cst_20 [1, 2] : vector<1x2x640xf32> to vector<1xf32>
      %29 = vector.shape_cast %28 : vector<1xf32> to vector<1x1x1xf32>
      %30 = vector.extract %29[0, 0, 0] : f32 from vector<1x1x1xf32>
      %31 = vector.broadcast %30 : f32 to vector<1x1x1xf32>
      %32 = arith.addf %26, %31 : vector<1x1x1xf32>
      %c0_21 = arith.constant 0 : index
      %c0_22 = arith.constant 0 : index
      %c0_23 = arith.constant 0 : index
      %33 = vector.load %arg8[%c0_21, %c0_22, %c0_23] : memref<1x1x1xf32, #tpu.memory_space<vmem>>, vector<1x1x1xf32>
      tpu.vector_store %arg8[%c0_21, %c0_22, %c0_23], %32 {strides = array<i32>} : memref<1x1x1xf32, #tpu.memory_space<vmem>>, vector<1x1x1xf32>,
    } else {
    }
    %c640_i32_14 = arith.constant 640 : i32
    %22 = arith.addi %17, %c640_i32_14 : i32
    %c1280_i32_15 = arith.constant 1280 : i32
    %23 = arith.cmpi sgt, %22, %c1280_i32_15 : i32
    %24 = arith.extui %23 : i1 to i32
    %c0_i32_16 = arith.constant 0 : i32
    %25 = arith.cmpi ne, %24, %c0_i32_16 : i32
    scf.if %25 {
      %26 = tpu.iota {dimensions = array<i32: 1>} : vector<2x640xi32>
      %27 = vector.broadcast %17 : i32 to vector<2x640xi32>
      %28 = arith.addi %27, %26 : vector<2x640xi32>
      %c0_17 = arith.constant 0 : index
      %c0_18 = arith.constant 0 : index
      %c0_19 = arith.constant 0 : index
      %29 = vector.load %arg8[%c0_17, %c0_18, %c0_19] : memref<1x1x1xf32, #tpu.memory_space<vmem>>, vector<1x1x1xf32>
      %c1280_i32_20 = arith.constant 1280 : i32
      %30 = vector.broadcast %c1280_i32_20 : i32 to vector<2x640xi32>
      %31 = arith.cmpi slt, %28, %30 : vector<2x640xi32>
      %32 = arith.extui %31 : vector<2x640xi1> to vector<2x640xi32>
      %33 = arith.sitofp %32 : vector<2x640xi32> to vector<2x640xf32>
      %34 = arith.mulf %14, %33 : vector<2x640xf32>
      %35 = vector.shape_cast %34 : vector<2x640xf32> to vector<1x2x640xf32>
      %cst_21 = arith.constant dense<0.000000e+00> : vector<1xf32>
      %36 = vector.multi_reduction <add>, %35, %cst_21 [1, 2] : vector<1x2x640xf32> to vector<1xf32>
      %37 = vector.shape_cast %36 : vector<1xf32> to vector<1x1x1xf32>
      %38 = vector.extract %37[0, 0, 0] : f32 from vector<1x1x1xf32>
      %39 = vector.broadcast %38 : f32 to vector<1x1x1xf32>
      %40 = arith.addf %29, %39 : vector<1x1x1xf32>
      %c0_22 = arith.constant 0 : index
      %c0_23 = arith.constant 0 : index
      %c0_24 = arith.constant 0 : index
      %41 = vector.load %arg8[%c0_22, %c0_23, %c0_24] : memref<1x1x1xf32, #tpu.memory_space<vmem>>, vector<1x1x1xf32>
      tpu.vector_store %arg8[%c0_22, %c0_23, %c0_24], %40 {strides = array<i32>} : memref<1x1x1xf32, #tpu.memory_space<vmem>>, vector<1x1x1xf32>,
    } else {
    }
    return
  }
  func.func @transform_0(%arg0: i32, %arg1: i32) -> (i32, i32) {
    %c0_i32 = arith.constant 0 : i32
    %c0_i32_0 = arith.constant 0 : i32
    %c0_i32_1 = arith.constant 0 : i32
    return %c0_i32, %c0_i32_0 : i32, i32
  }
  func.func @transform_1(%arg0: i32, %arg1: i32) -> (i32, i32) {
    %c0_i32 = arith.constant 0 : i32
    %c0_i32_0 = arith.constant 0 : i32
    %c0_i32_1 = arith.constant 0 : i32
    return %c0_i32, %c0_i32_0 : i32, i32
  }
  func.func @transform_2(%arg0: i32, %arg1: i32) -> (i32, i32) {
    %c1_i32 = arith.constant 1 : i32
    %0 = arith.muli %arg0, %c1_i32 : i32
    %1 = arith.addi %0, %arg1 : i32
    %c0_i32 = arith.constant 0 : i32
    %c0_i32_0 = arith.constant 0 : i32
    return %c0_i32, %1 : i32, i32
  }
  func.func @transform_3(%arg0: i32, %arg1: i32) -> (i32, i32) {
    %c1_i32 = arith.constant 1 : i32
    %0 = arith.muli %arg0, %c1_i32 : i32
    %1 = arith.addi %0, %arg1 : i32
    %c0_i32 = arith.constant 0 : i32
    %c0_i32_0 = arith.constant 0 : i32
    return %c0_i32, %1 : i32, i32
  }
  func.func @transform_4(%arg0: i32, %arg1: i32) -> (i32, i32) {
    %c1_i32 = arith.constant 1 : i32
    %0 = arith.muli %arg0, %c1_i32 : i32
    %1 = arith.addi %0, %arg1 : i32
    %c0_i32 = arith.constant 0 : i32
    %c0_i32_0 = arith.constant 0 : i32
    return %c0_i32, %1 : i32, i32
  }
  func.func @transform_5(%arg0: i32, %arg1: i32) -> (i32, i32) {
    %c1_i32 = arith.constant 1 : i32
    %0 = arith.muli %arg0, %c1_i32 : i32
    %1 = arith.addi %0, %arg1 : i32
    %c0_i32 = arith.constant 0 : i32
    %c0_i32_0 = arith.constant 0 : i32
    return %c0_i32, %1 : i32, i32
  }
  func.func @transform_6(%arg0: i32, %arg1: i32) -> (i32, i32, i32) {
    %c0_i32 = arith.constant 0 : i32
    %c0_i32_0 = arith.constant 0 : i32
    %c0_i32_1 = arith.constant 0 : i32
    return %arg0, %c0_i32, %c0_i32_0 : i32, i32, i32
  }
}

</mosaic_0001>

<llo_original>
// kernel: tpu_custom_call.1
$region0: #{tpu_custom_call.1}
  #allocation0 [shape = 'u32[]', space=smem, size = 0x4, offset = 0x4, fixed_abs, tag = 'smem constant byte address 0x4 - core index']
  #allocation1 [shape = 'u32[72,128]{1,0:T(1,128)}', space=vmem, size = 0x9000, scoped, tag = 'internal scratch']
  %s0 = inlined_call_operand.vmem [shape: f32[2,2], index: 0, kind: input, shape index: {}]
  %s1 = inlined_call_operand.vmem [shape: f32[2,1], index: 1, kind: input, shape index: {}]
  %s2 = inlined_call_operand.hbm [shape: f32[2,1280], index: 2, kind: input, shape index: {}]
  %s3 = inlined_call_operand.hbm [shape: f32[2,1280], index: 3, kind: input, shape index: {}]
  %s4 = inlined_call_operand.hbm [shape: f32[2,1280], index: 4, kind: input, shape index: {}]
  %s5 = inlined_call_operand.hbm [shape: f32[2,1280], index: 5, kind: output, shape index: {0}]
  %s6 = inlined_call_operand.vmem [shape: f32[2,1,1], index: 6, kind: output, shape index: {1}]
  %7 = xla_tuple %s5, %s6
  %s8 = sld [smem:[#allocation0]]
  $region85: #{tpu_custom_call.1} parent=0
    _
  %s10 = ssub.s32 1, %s8
  %s11 = scalar_select 0, %s10, %s8
  $region1: #{tpu_custom_call.1} parent=0
    #allocation2 [shape = 'u8[10240]{0}', space=vmem, size = 0x2800, scoped, tag = 'input window, operand 2']
    #allocation3 [shape = 's32[2]{0}', space=sflag, size = 0x8, scoped, tag = 'scoped memory for tpu_custom_call.1']
    #allocation4 [shape = 's32[2]{0}', space=sflag, size = 0x8, scoped, tag = 'scoped memory for tpu_custom_call.1']
    #allocation5 [shape = 'u8[10240]{0}', space=vmem, size = 0x2800, scoped, tag = 'input window, operand 3']
    #allocation6 [shape = 's32[2]{0}', space=sflag, size = 0x8, scoped, tag = 'scoped memory for tpu_custom_call.1']
    #allocation7 [shape = 'u8[10240]{0}', space=vmem, size = 0x2800, scoped, tag = 'input window, operand 4']
    #allocation8 [shape = 'u8[10240]{0}', space=vmem, size = 0x2800, scoped, tag = 'output window, operand 0']
    %12 = vsyncpa [#allocation3], 0
    %s13 = scalar_lea.sflag [#allocation3], 1
    %14 = vsyncpa %s13, 0
    %15 = vsyncpa [#allocation6], 0
    %s16 = scalar_lea.sflag [#allocation6], 1
    %17 = vsyncpa %s16, 0
    %18 = vsyncpa [#allocation4], 0
    %s19 = scalar_lea.sflag [#allocation4], 1
    %20 = vsyncpa %s19, 0
    loop: start=0, step=1, limit=4
    $region2: #{tpu_custom_call.1} parent=1 // loop_pre_header
      _
    $region3: #{tpu_custom_call.1} parent=1 // loop_header
      %s22 = sphi 0, %s26
      %p23 = scmp.ge.s32.totalorder %s22, 4
      %s29 = sphi 0, %s41
      %s30 = sphi 0, %s37
      %s31 = sphi 0, %s29
      %s32 = sphi 0, %s30
      %s33 = sphi 0, %s31
      %s34 = sphi 0, %s32
      %s42 = sphi 0, %s42
      %s44 = sphi 0, %s42
      %s45 = sphi 0, %s44
      %s59 = sphi 0, %s45
      %s63 = sphi 0, %s63
      %s65 = sphi 0, %s63
      %s66 = sphi 0, %s65
      %s80 = sphi 0, %s66
      %s88 = sphi 0, %s90
      %s91 = sphi 0, %s88
      %s92 = sphi 0, %s91
      %s108 = sphi 0, %s92
      %s116 = sphi 0, %s118
      %s119 = sphi 0, %s116
      %s120 = sphi 0, %s119
      %s136 = sphi 0, %s120
      %s144 = sphi 0, %s146
      %s147 = sphi 0, %s144
      %s148 = sphi 0, %s147
      %s164 = sphi 0, %s148
      %s172 = sphi 0, %s174
      %s175 = sphi 0, %s172
      %s176 = sphi 0, %s175
      %s192 = sphi 0, %s176
      %s198 = sphi 0, %s200
      %s201 = sphi 0, %s198
      %s202 = sphi 0, %s201
      %s218 = sphi 0, %s202
    $region4: #{tpu_custom_call.1} parent=1 // loop_header_branch
      %25 = sbr.rel (%p23) target = $region8
    $region5: #{tpu_custom_call.1} parent=1 // loop_body
      %s27 = ssub.s32 %s22, 1
      %s28 = ssub.s32 %s22, 2
      %s35 = sadd.s32 1, %s30
      %p36 = scmp.ge.s32.totalorder %s35, 1
      %s37 = scalar_select %p36, 0, %s35
      %s38 = sadd.s32 1, %s29
      %s39 = scalar_select %p36, %s38, %s29
      %p40 = scmp.ge.s32.totalorder %s39, 2
      %s41 = scalar_select %p40, 0, %s39
      %s43 = sadd.s32 %s42, 1
      %p46 = scmp.eq.s32.totalorder %s22, 1
      %p47 = scmp.ne.s32.totalorder %s42, %s44
      %p48 = scmp.eq.s32.totalorder %s22, 0
      %p49 = por %p47, %p48
      %p50 = scmp.ne.s32.totalorder %s42, %s44
      %p51 = scmp.eq.s32.totalorder %s27, 1
      %p52 = por %p50, %p51
      %p53 = scmp.ne.s32.totalorder %s44, %s45
      %p54 = scmp.eq.s32.totalorder %s27, 0
      %p55 = por %p53, %p54
      %p56 = scmp.ne.s32.totalorder %s44, %s45
      %p57 = scmp.eq.s32.totalorder %s28, 1
      %p58 = por %p56, %p57
      %p60 = scmp.ne.s32.totalorder %s45, %s59
      %p61 = scmp.eq.s32.totalorder %s28, 0
      %p62 = por %p60, %p61
      %s64 = sadd.s32 %s63, 1
      %p67 = scmp.eq.s32.totalorder %s22, 1
      %p68 = scmp.ne.s32.totalorder %s63, %s65
      %p69 = scmp.eq.s32.totalorder %s22, 0
      %p70 = por %p68, %p69
      %p71 = scmp.ne.s32.totalorder %s63, %s65
      %p72 = scmp.eq.s32.totalorder %s27, 1
      %p73 = por %p71, %p72
      %p74 = scmp.ne.s32.totalorder %s65, %s66
      %p75 = scmp.eq.s32.totalorder %s27, 0
      %p76 = por %p74, %p75
      %p77 = scmp.ne.s32.totalorder %s65, %s66
      %p78 = scmp.eq.s32.totalorder %s28, 1
      %p79 = por %p77, %p78
      %p81 = scmp.ne.s32.totalorder %s66, %s80
      %p82 = scmp.eq.s32.totalorder %s28, 0
      %p83 = por %p81, %p82
      %s84 = sadd.s32 %s29, %s30
      %s85 = sadd.s32 %s41, %s37
      %s86 = ssub.s32 %s84, %s85
      %p87 = scmp.eq.s32.totalorder %s86, 0
      %s89 = sadd.s32 %s88, 1
      %s90 = scalar_select %p87, %s88, %s89
      %p93 = pneg %p87
      %p94 = scmp.eq.s32.totalorder %s22, 1
      %p95 = por %p93, %p94
      %p96 = scmp.ne.s32.totalorder %s88, %s91
      %p97 = scmp.eq.s32.totalorder %s22, 0
      %p98 = por %p96, %p97
      %p99 = scmp.ne.s32.totalorder %s88, %s91
      %p100 = scmp.eq.s32.totalorder %s27, 1
      %p101 = por %p99, %p100
      %p102 = scmp.ne.s32.totalorder %s91, %s92
      %p103 = scmp.eq.s32.totalorder %s27, 0
      %p104 = por %p102, %p103
      %p105 = scmp.ne.s32.totalorder %s91, %s92
      %p106 = scmp.eq.s32.totalorder %s28, 1
      %p107 = por %p105, %p106
      %p109 = scmp.ne.s32.totalorder %s92, %s108
      %p110 = scmp.eq.s32.totalorder %s28, 0
      %p111 = por %p109, %p110
      %s112 = sadd.s32 %s29, %s30
      %s113 = sadd.s32 %s41, %s37
      %s114 = ssub.s32 %s112, %s113
      %p115 = scmp.eq.s32.totalorder %s114, 0
      %s117 = sadd.s32 %s116, 1
      %s118 = scalar_select %p115, %s116, %s117
      %p121 = pneg %p115
      %p122 = scmp.eq.s32.totalorder %s22, 1
      %p123 = por %p121, %p122
      %p124 = scmp.ne.s32.totalorder %s116, %s119
      %p125 = scmp.eq.s32.totalorder %s22, 0
      %p126 = por %p124, %p125
      %p127 = scmp.ne.s32.totalorder %s116, %s119
      %p128 = scmp.eq.s32.totalorder %s27, 1
      %p129 = por %p127, %p128
      %p130 = scmp.ne.s32.totalorder %s119, %s120
      %p131 = scmp.eq.s32.totalorder %s27, 0
      %p132 = por %p130, %p131
      %p133 = scmp.ne.s32.totalorder %s119, %s120
      %p134 = scmp.eq.s32.totalorder %s28, 1
      %p135 = por %p133, %p134
      %p137 = scmp.ne.s32.totalorder %s120, %s136
      %p138 = scmp.eq.s32.totalorder %s28, 0
      %p139 = por %p137, %p138
      %s140 = sadd.s32 %s29, %s30
      %s141 = sadd.s32 %s41, %s37
      %s142 = ssub.s32 %s140, %s141
      %p143 = scmp.eq.s32.totalorder %s142, 0
      %s145 = sadd.s32 %s144, 1
      %s146 = scalar_select %p143, %s144, %s145
      %p149 = pneg %p143
      %p150 = scmp.eq.s32.totalorder %s22, 1
      %p151 = por %p149, %p150
      %p152 = scmp.ne.s32.totalorder %s144, %s147
      %p153 = scmp.eq.s32.totalorder %s22, 0
      %p154 = por %p152, %p153
      %p155 = scmp.ne.s32.totalorder %s144, %s147
      %p156 = scmp.eq.s32.totalorder %s27, 1
      %p157 = por %p155, %p156
      %p158 = scmp.ne.s32.totalorder %s147, %s148
      %p159 = scmp.eq.s32.totalorder %s27, 0
      %p160 = por %p158, %p159
      %p161 = scmp.ne.s32.totalorder %s147, %s148
      %p162 = scmp.eq.s32.totalorder %s28, 1
      %p163 = por %p161, %p162
      %p165 = scmp.ne.s32.totalorder %s148, %s164
      %p166 = scmp.eq.s32.totalorder %s28, 0
      %p167 = por %p165, %p166
      %s168 = sadd.s32 %s29, %s30
      %s169 = sadd.s32 %s41, %s37
      %s170 = ssub.s32 %s168, %s169
      %p171 = scmp.eq.s32.totalorder %s170, 0
      %s173 = sadd.s32 %s172, 1
      %s174 = scalar_select %p171, %s172, %s173
      %p177 = pneg %p171
      %p178 = scmp.eq.s32.totalorder %s22, 1
      %p179 = por %p177, %p178
      %p180 = scmp.ne.s32.totalorder %s172, %s175
      %p181 = scmp.eq.s32.totalorder %s22, 0
      %p182 = por %p180, %p181
      %p183 = scmp.ne.s32.totalorder %s172, %s175
      %p184 = scmp.eq.s32.totalorder %s27, 1
      %p185 = por %p183, %p184
      %p186 = scmp.ne.s32.totalorder %s175, %s176
      %p187 = scmp.eq.s32.totalorder %s27, 0
      %p188 = por %p186, %p187
      %p189 = scmp.ne.s32.totalorder %s175, %s176
      %p190 = scmp.eq.s32.totalorder %s28, 1
      %p191 = por %p189, %p190
      %p193 = scmp.ne.s32.totalorder %s176, %s192
      %p194 = scmp.eq.s32.totalorder %s28, 0
      %p195 = por %p193, %p194
      %s196 = ssub.s32 %s29, %s41
      %p197 = scmp.eq.s32.totalorder %s196, 0
      %s199 = sadd.s32 %s198, 1
      %s200 = scalar_select %p197, %s198, %s199
      %p203 = pneg %p197
      %p204 = scmp.eq.s32.totalorder %s22, 1
      %p205 = por %p203, %p204
      %p206 = scmp.ne.s32.totalorder %s198, %s201
      %p207 = scmp.eq.s32.totalorder %s22, 0
      %p208 = por %p206, %p207
      %p209 = scmp.ne.s32.totalorder %s198, %s201
      %p210 = scmp.eq.s32.totalorder %s27, 1
      %p211 = por %p209, %p210
      %p212 = scmp.ne.s32.totalorder %s201, %s202
      %p213 = scmp.eq.s32.totalorder %s27, 0
      %p214 = por %p212, %p213
      %p215 = scmp.ne.s32.totalorder %s201, %s202
      %p216 = scmp.eq.s32.totalorder %s28, 1
      %p217 = por %p215, %p216
      %p219 = scmp.ne.s32.totalorder %s202, %s218
      %p220 = scmp.eq.s32.totalorder %s28, 0
      %p221 = por %p219, %p220
      %p222 = scmp.le.s32.totalorder 1, %s22
      %p223 = scmp.lt.s32.totalorder %s22, 3
      %p224 = pnand %p222, %p223
      %p225 = pneg %p224
      // Predicated region
      $region9: #{tpu_custom_call.1} parent=5 // pred_check
        _
      $region10: #{tpu_custom_call.1} parent=5 // pred_check_branch
        %227 = sbr.rel (%p224) target = $region12
      $region11: #{tpu_custom_call.1} parent=5 // pred_region
        %s228 = ssub.s32 %s22, 1
        // Predicated region
        $region13: #{tpu_custom_call.1} parent=11 // pred_check
          %p229 = pneg %p55
        $region14: #{tpu_custom_call.1} parent=11 // pred_check_branch
          %231 = sbr.rel (%p229) target = $region16
        $region15: #{tpu_custom_call.1} parent=11 // pred_region
          _
        $region16: #{tpu_custom_call.1} parent=11 // pred_fallthru
          _
        // Predicated region
        $region17: #{tpu_custom_call.1} parent=11 // pred_check
          %p232 = pneg %p76
        $region18: #{tpu_custom_call.1} parent=11 // pred_check_branch
          %234 = sbr.rel (%p232) target = $region20
        $region19: #{tpu_custom_call.1} parent=11 // pred_region
          _
        $region20: #{tpu_custom_call.1} parent=11 // pred_fallthru
          _
      $region12: #{tpu_custom_call.1} parent=5 // pred_fallthru
        _
      %p235 = scmp.lt.s32.totalorder %s22, 2
      // Predicated region
      $region21: #{tpu_custom_call.1} parent=5 // pred_check
        %p236 = pneg %p235
      $region22: #{tpu_custom_call.1} parent=5 // pred_check_branch
        %238 = sbr.rel (%p236) target = $region24
      $region23: #{tpu_custom_call.1} parent=5 // pred_region
        // Predicated region
        $region25: #{tpu_custom_call.1} parent=23 // pred_check
          %p239 = pneg %p98
        $region26: #{tpu_custom_call.1} parent=23 // pred_check_branch
          %241 = sbr.rel (%p239) target = $region28
        $region27: #{tpu_custom_call.1} parent=23 // pred_region
          %s242 = sand.u32 %s88, 1
          %s243 = scalar_lea.sflag [#allocation3], %s242
          %s244 = sand.u32 %s88, 1
          %s245 = smul.addr %s244, 10
          %s246 = scalar_lea.vmem [#allocation2], %s245
          %s247 = sadd.s32 %s29, %s30
          %s248 = smul.u32 5, %s247
          %250 = vsyncadd %s243, 0
          %s251 = smul.addr %s248, 2
          %s252 = scalar_lea.hbm %s2, %s251
          %s254 = sshll.u32 %s252, 4
          %s255 = int_to_ptr.hbm [resolvable:$true] %s254
          %s256 = sshll.u32 %s246, 4
          %s257 = int_to_ptr.vmem [resolvable:$true] %s256
          %259 = dma.hbm_to_vmem [thread:$0]  %s255, 160, %s257, %s243
        $region28: #{tpu_custom_call.1} parent=23 // pred_fallthru
          _
        // Predicated region
        $region29: #{tpu_custom_call.1} parent=23 // pred_check
          %p260 = pneg %p126
        $region30: #{tpu_custom_call.1} parent=23 // pred_check_branch
          %262 = sbr.rel (%p260) target = $region32
        $region31: #{tpu_custom_call.1} parent=23 // pred_region
          %s263 = sand.u32 %s22, 1
          %s264 = scalar_lea.sflag [#allocation6], %s263
          %s265 = sand.u32 %s116, 1
          %s266 = smul.addr %s265, 10
          %s267 = scalar_lea.vmem [#allocation5], %s266
          %s268 = sadd.s32 %s29, %s30
          %s269 = smul.u32 5, %s268
          %271 = vsyncadd %s264, 0
          %s272 = smul.addr %s269, 2
          %s273 = scalar_lea.hbm %s3, %s272
          %s275 = sshll.u32 %s273, 4
          %s276 = int_to_ptr.hbm [resolvable:$true] %s275
          %s277 = sshll.u32 %s267, 4
          %s278 = int_to_ptr.vmem [resolvable:$true] %s277
          %280 = dma.hbm_to_vmem [thread:$0]  %s276, 160, %s278, %s264
        $region32: #{tpu_custom_call.1} parent=23 // pred_fallthru
          _
        // Predicated region
        $region33: #{tpu_custom_call.1} parent=23 // pred_check
          %p281 = pneg %p154
        $region34: #{tpu_custom_call.1} parent=23 // pred_check_branch
          %283 = sbr.rel (%p281) target = $region36
        $region35: #{tpu_custom_call.1} parent=23 // pred_region
          %s284 = sand.u32 %s22, 1
          %s285 = scalar_lea.sflag [#allocation6], %s284
          %s286 = sand.u32 %s144, 1
          %s287 = smul.addr %s286, 10
          %s288 = scalar_lea.vmem [#allocation7], %s287
          %s289 = sadd.s32 %s29, %s30
          %s290 = smul.u32 5, %s289
          %292 = vsyncadd %s285, 0
          %s293 = smul.addr %s290, 2
          %s294 = scalar_lea.hbm %s4, %s293
          %s296 = sshll.u32 %s294, 4
          %s297 = int_to_ptr.hbm [resolvable:$true] %s296
          %s298 = sshll.u32 %s288, 4
          %s299 = int_to_ptr.vmem [resolvable:$true] %s298
          %301 = dma.hbm_to_vmem [thread:$0]  %s297, 160, %s299, %s285
        $region36: #{tpu_custom_call.1} parent=23 // pred_fallthru
          _
      $region24: #{tpu_custom_call.1} parent=5 // pred_fallthru
        _
      %p302 = scmp.le.s32.totalorder 1, %s22
      %p303 = scmp.lt.s32.totalorder %s22, 3
      %p304 = pnand %p302, %p303
      %p305 = pneg %p304
      // Predicated region
      $region37: #{tpu_custom_call.1} parent=5 // pred_check
        _
      $region38: #{tpu_custom_call.1} parent=5 // pred_check_branch
        %307 = sbr.rel (%p304) target = $region40
      $region39: #{tpu_custom_call.1} parent=5 // pred_region
        %s308 = ssub.s32 %s22, 1
        %s309 = sand.u32 %s91, 1
        %s310 = scalar_lea.sflag [#allocation3], %s309
        %s311 = sand.u32 %s91, 1
        %s312 = smul.addr %s311, 10
        %s313 = scalar_lea.vmem [#allocation2], %s312
        // Predicated region
        $region41: #{tpu_custom_call.1} parent=39 // pred_check
          %p314 = pneg %p104
        $region42: #{tpu_custom_call.1} parent=39 // pred_check_branch
          %316 = sbr.rel (%p314) target = $region44
        $region43: #{tpu_custom_call.1} parent=39 // pred_region
          %318 = dma.done %s310, 160
        $region44: #{tpu_custom_call.1} parent=39 // pred_fallthru
          _
        %s319 = sand.u32 %s27, 1
        %s320 = scalar_lea.sflag [#allocation6], %s319
        %s321 = sand.u32 %s119, 1
        %s322 = smul.addr %s321, 10
        %s323 = scalar_lea.vmem [#allocation5], %s322
        // Predicated region
        $region45: #{tpu_custom_call.1} parent=39 // pred_check
          %p324 = pneg %p132
        $region46: #{tpu_custom_call.1} parent=39 // pred_check_branch
          %326 = sbr.rel (%p324) target = $region48
        $region47: #{tpu_custom_call.1} parent=39 // pred_region
          %328 = dma.done %s320, 160
        $region48: #{tpu_custom_call.1} parent=39 // pred_fallthru
          _
        %s329 = sand.u32 %s27, 1
        %s330 = scalar_lea.sflag [#allocation6], %s329
        %s331 = sand.u32 %s147, 1
        %s332 = smul.addr %s331, 10
        %s333 = scalar_lea.vmem [#allocation7], %s332
        // Predicated region
        $region49: #{tpu_custom_call.1} parent=39 // pred_check
          %p334 = pneg %p160
        $region50: #{tpu_custom_call.1} parent=39 // pred_check_branch
          %336 = sbr.rel (%p334) target = $region52
        $region51: #{tpu_custom_call.1} parent=39 // pred_region
          %338 = dma.done %s330, 160
        $region52: #{tpu_custom_call.1} parent=39 // pred_fallthru
          _
        %p339 = pneg %p55
        %p340 = pneg %p52
        %p341 = pneg %p76
        %p342 = pneg %p73
        %s343 = sand.u32 %s91, 1
        %s344 = scalar_lea.sflag [#allocation3], %s343
        %s345 = sand.u32 %s91, 1
        %s346 = smul.addr %s345, 10
        %s347 = scalar_lea.vmem [#allocation2], %s346
        %p348 = pneg %p104
        %p349 = pneg %p101
        %s350 = sand.u32 %s27, 1
        %s351 = scalar_lea.sflag [#allocation6], %s350
        %s352 = sand.u32 %s119, 1
        %s353 = smul.addr %s352, 10
        %s354 = scalar_lea.vmem [#allocation5], %s353
        %p355 = pneg %p132
        %p356 = pneg %p129
        %s357 = sand.u32 %s27, 1
        %s358 = scalar_lea.sflag [#allocation6], %s357
        %s359 = sand.u32 %s147, 1
        %s360 = smul.addr %s359, 10
        %s361 = scalar_lea.vmem [#allocation7], %s360
        %p362 = pneg %p160
        %p363 = pneg %p157
        %p364 = pneg %p188
        %p365 = pneg %p185
        %s366 = sand.u32 %s175, 1
        %s367 = scalar_lea.sflag [#allocation4], %s366
        %s368 = sand.u32 %s175, 1
        %s369 = smul.addr %s368, 10
        %s370 = scalar_lea.vmem [#allocation8], %s369
        %p371 = pneg %p214
        %p372 = pneg %p211
        %p373 = scmp.lt.s32.totalorder %s31, 1
        %s374 = scalar_select %p373, %s31, 1
        %s375 = scalar_lea.vmem %s6, %s374
        %s376 = sadd.s32 %s31, %s32
        %s377 = smul.u32 5, %s376
        %s378 = sadd.s32 %s31, %s32
        %s379 = smul.u32 5, %s378
        %s380 = sadd.s32 %s31, %s32
        %s381 = smul.u32 5, %s380
        %s382 = sadd.s32 %s31, %s32
        %s383 = smul.u32 5, %s382
        %p384 = scmp.lt.s32.totalorder %s31, 1
        %s385 = scalar_select %p384, %s31, 1
        %s386 = scalar_lea.vmem %s6, %s385
        %p387 = scmp.eq.s32.totalorder %s32, 0
        // Predicated region
        $region53: #{tpu_custom_call.1} parent=39 // pred_check
          %p388 = pneg %p387
        $region54: #{tpu_custom_call.1} parent=39 // pred_check_branch
          %390 = sbr.rel (%p388) target = $region56
        $region55: #{tpu_custom_call.1} parent=39 // pred_region
          %vm391 = vcmask 0
          %392 = vst.msk [vmem:[%s386] sm:$0x1] %vm391, 0.0
        $region56: #{tpu_custom_call.1} parent=39 // pred_fallthru
          _
        %v393 = vld [vmem:[%s0] sm:$0x3]
        %v394 = vld [vmem:[%s313] sm:$0xff]
        %v395 = vld [vmem:[%s313 + $0x8] sm:$0x3]
        %v396 = vld [vmem:[%s323] sm:$0xff]
        %v397 = vld [vmem:[%s323 + $0x8] sm:$0x3]
        %400 = vst [vmem:[#allocation1] ss:$4 sm:$0xff] %v394
        %s401 = scalar_lea.vmem [#allocation1], 32
        %402 = vst [vmem:[%s401] ss:$4 sm:$0xff] %v395
        %v403 = vld.sshfl [vmem:[#allocation1] sm:$0xff pattern:$0x73625140]
        %v404 = vld.sshfl [vmem:[#allocation1 + $0x8] sm:$0xff pattern:$0x73625140]
        %v405 = vld.sshfl [vmem:[#allocation1 + $0x10] sm:$0xff pattern:$0x73625140]
        %v406 = vld.sshfl [vmem:[#allocation1 + $0x18] sm:$0xff pattern:$0x73625140]
        %v407 = vld.sshfl [vmem:[#allocation1 + $0x20] sm:$0xff pattern:$0x73625140]
        %410 = vst [vmem:[#allocation1] ss:$4 sm:$0xff] %v396
        %s411 = scalar_lea.vmem [#allocation1], 32
        %412 = vst [vmem:[%s411] ss:$4 sm:$0xff] %v397
        %v413 = vld.sshfl [vmem:[#allocation1] sm:$0xff pattern:$0x73625140]
        %v414 = vld.sshfl [vmem:[#allocation1 + $0x8] sm:$0xff pattern:$0x73625140]
        %v415 = vld.sshfl [vmem:[#allocation1 + $0x10] sm:$0xff pattern:$0x73625140]
        %v416 = vld.sshfl [vmem:[#allocation1 + $0x18] sm:$0xff pattern:$0x73625140]
        %v417 = vld.sshfl [vmem:[#allocation1 + $0x20] sm:$0xff pattern:$0x73625140]
        %vm423 = vcmask 15360
        %v425 = vsel %vm423, %v393, 0
        %vm427 = vcmask 1041408
        %v428 = vsel %vm427, %v403, 0
        %v430 = vsel %vm427, %v404, 0
        %v432 = vsel %vm427, %v405, 0
        %v434 = vsel %vm427, %v406, 0
        %v436 = vsel %vm427, %v407, 0
        %438 = vmatpush.msra.mxu0 0.0
        %439 = vmatpush.msra.mxu0 0.0
        %440 = vmatpush.msra.mxu0 0.0
        %441 = vmatpush.msra.mxu0 0.0
        %442 = vmatpush.msra.mxu0 0.0
        %443 = vmatpush.msra.mxu0 0.0
        %444 = vmatpush.msra.mxu0 0.0
        %445 = vmatpush.msra.mxu0 0.0
        %446 = vmatpush.msra.mxu0 0.0
        %447 = vmatpush.msra.mxu0 0.0
        %448 = vmatpush.msra.mxu0 0.0
        %449 = vmatpush.msra.mxu0 0.0
        %450 = vmatpush.msra.mxu0 0.0
        %451 = vmatpush.msra.mxu0 0.0
        %452 = vmatpush.msra.mxu0 0.0
        %453 = vmatpush.msra.mxu0 %v428
        %454 = vmatmul.f32.gmra.mxu0 %v425
        %v455 = vpop.f32.mrf.mxu0
        %v456 = vadd.f32 %v413, %v455
        %457 = vdwg.mxu0
        %458 = vmatpush.msra.mxu0 0.0
        %459 = vmatpush.msra.mxu0 0.0
        %460 = vmatpush.msra.mxu0 0.0
        %461 = vmatpush.msra.mxu0 0.0
        %462 = vmatpush.msra.mxu0 0.0
        %463 = vmatpush.msra.mxu0 0.0
        %464 = vmatpush.msra.mxu0 0.0
        %465 = vmatpush.msra.mxu0 0.0
        %466 = vmatpush.msra.mxu0 0.0
        %467 = vmatpush.msra.mxu0 0.0
        %468 = vmatpush.msra.mxu0 0.0
        %469 = vmatpush.msra.mxu0 0.0
        %470 = vmatpush.msra.mxu0 0.0
        %471 = vmatpush.msra.mxu0 0.0
        %472 = vmatpush.msra.mxu0 0.0
        %473 = vmatpush.msra.mxu0 %v430
        %474 = vmatmul.f32.gmra.mxu0 %v425
        %v475 = vpop.f32.mrf.mxu0
        %v476 = vadd.f32 %v414, %v475
        %477 = vdwg.mxu0
        %478 = vmatpush.msra.mxu0 0.0
        %479 = vmatpush.msra.mxu0 0.0
        %480 = vmatpush.msra.mxu0 0.0
        %481 = vmatpush.msra.mxu0 0.0
        %482 = vmatpush.msra.mxu0 0.0
        %483 = vmatpush.msra.mxu0 0.0
        %484 = vmatpush.msra.mxu0 0.0
        %485 = vmatpush.msra.mxu0 0.0
        %486 = vmatpush.msra.mxu0 0.0
        %487 = vmatpush.msra.mxu0 0.0
        %488 = vmatpush.msra.mxu0 0.0
        %489 = vmatpush.msra.mxu0 0.0
        %490 = vmatpush.msra.mxu0 0.0
        %491 = vmatpush.msra.mxu0 0.0
        %492 = vmatpush.msra.mxu0 0.0
        %493 = vmatpush.msra.mxu0 %v432
        %494 = vmatmul.f32.gmra.mxu0 %v425
        %v495 = vpop.f32.mrf.mxu0
        %v496 = vadd.f32 %v415, %v495
        %497 = vdwg.mxu0
        %498 = vmatpush.msra.mxu0 0.0
        %499 = vmatpush.msra.mxu0 0.0
        %500 = vmatpush.msra.mxu0 0.0
        %501 = vmatpush.msra.mxu0 0.0
        %502 = vmatpush.msra.mxu0 0.0
        %503 = vmatpush.msra.mxu0 0.0
        %504 = vmatpush.msra.mxu0 0.0
        %505 = vmatpush.msra.mxu0 0.0
        %506 = vmatpush.msra.mxu0 0.0
        %507 = vmatpush.msra.mxu0 0.0
        %508 = vmatpush.msra.mxu0 0.0
        %509 = vmatpush.msra.mxu0 0.0
        %510 = vmatpush.msra.mxu0 0.0
        %511 = vmatpush.msra.mxu0 0.0
        %512 = vmatpush.msra.mxu0 0.0
        %513 = vmatpush.msra.mxu0 %v434
        %514 = vmatmul.f32.gmra.mxu0 %v425
        %v515 = vpop.f32.mrf.mxu0
        %v516 = vadd.f32 %v416, %v515
        %517 = vdwg.mxu0
        %518 = vmatpush.msra.mxu0 0.0
        %519 = vmatpush.msra.mxu0 0.0
        %520 = vmatpush.msra.mxu0 0.0
        %521 = vmatpush.msra.mxu0 0.0
        %522 = vmatpush.msra.mxu0 0.0
        %523 = vmatpush.msra.mxu0 0.0
        %524 = vmatpush.msra.mxu0 0.0
        %525 = vmatpush.msra.mxu0 0.0
        %526 = vmatpush.msra.mxu0 0.0
        %527 = vmatpush.msra.mxu0 0.0
        %528 = vmatpush.msra.mxu0 0.0
        %529 = vmatpush.msra.mxu0 0.0
        %530 = vmatpush.msra.mxu0 0.0
        %531 = vmatpush.msra.mxu0 0.0
        %532 = vmatpush.msra.mxu0 0.0
        %533 = vmatpush.msra.mxu0 %v436
        %534 = vmatmul.f32.gmra.mxu0 %v425
        %v535 = vpop.f32.mrf.mxu0
        %v536 = vadd.f32 %v417, %v535
        %537 = vdwg.mxu0
        %v538 = vld [vmem:[%s1] sm:$0x3]
        %540 = vset.pattern.permute.xlu0 0
        %541 = vperm.xlu0 %540, %v538
        %v542 = vpop.permute.xlu0 %541
        %v544 = vadd.f32 %v456, %v542
        %v545 = vadd.f32 %v476, %v542
        %v546 = vadd.f32 %v496, %v542
        %v547 = vadd.f32 %v516, %v542
        %v548 = vadd.f32 %v536, %v542
        %v553 = vrot.slane %v545, 6
        %v554 = vrot.slane %v546, 4
        %v555 = vrot.slane %v547, 2
        %v556 = vsel %vm427, %v544, %v553
        %vm557 = vcmask 1045508
        %v558 = vsel %vm557, %v554, %v555
        %vm559 = vcmask 1043456
        %v560 = vsel %vm559, %v556, %v558
        %562 = vst [vmem:[%s370] sm:$0xff] %v560
        %563 = vst [vmem:[%s370 + $0x8] sm:$0x3] %v548
        %v564 = vld [vmem:[%s333] sm:$0xff]
        %v565 = vld [vmem:[%s333 + $0x8] sm:$0x3]
        %568 = vst [vmem:[#allocation1] ss:$4 sm:$0xff] %v564
        %s569 = scalar_lea.vmem [#allocation1], 32
        %570 = vst [vmem:[%s569] ss:$4 sm:$0xff] %v565
        %v571 = vld.sshfl [vmem:[#allocation1] sm:$0xff pattern:$0x73625140]
        %v572 = vld.sshfl [vmem:[#allocation1 + $0x8] sm:$0xff pattern:$0x73625140]
        %v573 = vld.sshfl [vmem:[#allocation1 + $0x10] sm:$0xff pattern:$0x73625140]
        %v574 = vld.sshfl [vmem:[#allocation1 + $0x18] sm:$0xff pattern:$0x73625140]
        %v575 = vld.sshfl [vmem:[#allocation1 + $0x20] sm:$0xff pattern:$0x73625140]
        %v581 = vsub.f32 %v544, %v571
        %v582 = vsub.f32 %v545, %v572
        %v583 = vsub.f32 %v546, %v573
        %v584 = vsub.f32 %v547, %v574
        %v585 = vsub.f32 %v548, %v575
        %v586 = vand.u32 2147483647, %v581
        %v587 = vand.u32 2147483647, %v582
        %v588 = vand.u32 2147483647, %v583
        %v589 = vand.u32 2147483647, %v584
        %v590 = vand.u32 2147483647, %v585
        %s591 = sadd.s32 %s31, %s32
        %s592 = smul.u32 %s591, 640
        %s593 = sadd.s32 %s592, 640
        %p594 = scmp.le.s32.totalorder %s593, 1280
        // Predicated region
        $region57: #{tpu_custom_call.1} parent=39 // pred_check
          %p595 = pneg %p594
        $region58: #{tpu_custom_call.1} parent=39 // pred_check_branch
          %597 = sbr.rel (%p595) target = $region60
        $region59: #{tpu_custom_call.1} parent=39 // pred_region
          %v598 = vld [vmem:[%s386] sm:$0x1]
          %v599 = vsel %vm427, %v586, 0.0
          %v600 = vsel %vm427, %v587, 0.0
          %v601 = vadd.f32 %v599, %v600
          %v602 = vsel %vm427, %v588, 0.0
          %v603 = vadd.f32 %v601, %v602
          %v604 = vsel %vm427, %v589, 0.0
          %v605 = vadd.f32 %v603, %v604
          %v606 = vsel %vm427, %v590, 0.0
          %v607 = vadd.f32 %v605, %v606
          %608 = vadd.xlane.f32.xlu0 %v607
          %v609 = vpop.xlane.xlu0 %608
          %v610 = vrot.slane %v609, 4
          %v611 = vadd.f32 %v609, %v610
          %v612 = vrot.slane %v611, 2
          %v613 = vadd.f32 %v611, %v612
          %v614 = vrot.slane %v613, 1
          %v615 = vadd.f32 %v613, %v614
          %s616 = vtos %v615
          %v617 = vstv %s616
          %v618 = vadd.f32 %v598, %v617
          %vm619 = vcmask 0
          %620 = vst.msk [vmem:[%s386] sm:$0x1] %vm619, %v618
        $region60: #{tpu_custom_call.1} parent=39 // pred_fallthru
          _
        %p621 = scmp.gt.s32.totalorder %s593, 1280
        // Predicated region
        $region61: #{tpu_custom_call.1} parent=39 // pred_check
          %p622 = pneg %p621
        $region62: #{tpu_custom_call.1} parent=39 // pred_check_branch
          %624 = sbr.rel (%p622) target = $region64
        $region63: #{tpu_custom_call.1} parent=39 // pred_region
          %v625 = vlaneseq
          %v626 = vand.u32 %v625, 127
          %v627 = vadd.s32 %v626, 128
          %v628 = vadd.s32 %v626, 256
          %v629 = vadd.s32 %v626, 384
          %v630 = vadd.s32 %v626, 512
          %v631 = vstv %s592
          %v632 = vadd.s32 %v631, %v626
          %v633 = vadd.s32 %v631, %v627
          %v634 = vadd.s32 %v631, %v628
          %v635 = vadd.s32 %v631, %v629
          %v636 = vadd.s32 %v631, %v630
          %v637 = vld [vmem:[%s386] sm:$0x1]
          %vm638 = vcmp.lt.s32.totalorder %v632, 1280
          %vm639 = vcmp.lt.s32.totalorder %v633, 1280
          %vm640 = vcmp.lt.s32.totalorder %v634, 1280
          %vm641 = vcmp.lt.s32.totalorder %v635, 1280
          %vm642 = vcmp.lt.s32.totalorder %v636, 1280
          %v643 = vsel %vm638, 1, 0
          %v644 = vsel %vm639, 1, 0
          %v645 = vsel %vm640, 1, 0
          %v646 = vsel %vm641, 1, 0
          %v647 = vsel %vm642, 1, 0
          %v648 = vcvt.s32.f32 %v643
          %v649 = vcvt.s32.f32 %v644
          %v650 = vcvt.s32.f32 %v645
          %v651 = vcvt.s32.f32 %v646
          %v652 = vcvt.s32.f32 %v647
          %v653 = vmul.f32 %v586, %v648
          %v654 = vmul.f32 %v587, %v649
          %v655 = vmul.f32 %v588, %v650
          %v656 = vmul.f32 %v589, %v651
          %v657 = vmul.f32 %v590, %v652
          %v658 = vsel %vm427, %v653, 0.0
          %v659 = vsel %vm427, %v654, 0.0
          %v660 = vadd.f32 %v658, %v659
          %v661 = vsel %vm427, %v655, 0.0
          %v662 = vadd.f32 %v660, %v661
          %v663 = vsel %vm427, %v656, 0.0
          %v664 = vadd.f32 %v662, %v663
          %v665 = vsel %vm427, %v657, 0.0
          %v666 = vadd.f32 %v664, %v665
          %667 = vadd.xlane.f32.xlu0 %v666
          %v668 = vpop.xlane.xlu0 %667
          %v669 = vrot.slane %v668, 4
          %v670 = vadd.f32 %v668, %v669
          %v671 = vrot.slane %v670, 2
          %v672 = vadd.f32 %v670, %v671
          %v673 = vrot.slane %v672, 1
          %v674 = vadd.f32 %v672, %v673
          %s675 = vtos %v674
          %v676 = vstv %s675
          %v677 = vadd.f32 %v637, %v676
          %vm678 = vcmask 0
          %679 = vst.msk [vmem:[%s386] sm:$0x1] %vm678, %v677
        $region64: #{tpu_custom_call.1} parent=39 // pred_fallthru
          _
        %s680 = sand.u32 %s175, 1
        %s681 = scalar_lea.sflag [#allocation4], %s680
        %s682 = sand.u32 %s175, 1
        %s683 = smul.addr %s682, 10
        %s684 = scalar_lea.vmem [#allocation8], %s683
        %p685 = scmp.lt.s32.totalorder %s31, 1
        %s686 = scalar_select %p685, %s31, 1
        %s687 = scalar_lea.vmem %s6, %s686
        // Predicated region
        $region65: #{tpu_custom_call.1} parent=39 // pred_check
          %p688 = pneg %p185
        $region66: #{tpu_custom_call.1} parent=39 // pred_check_branch
          %690 = sbr.rel (%p688) target = $region68
        $region67: #{tpu_custom_call.1} parent=39 // pred_region
          %s691 = sadd.s32 %s31, %s32
          %s692 = smul.u32 5, %s691
          %694 = vsyncadd %s681, 0
          %s695 = smul.addr %s692, 2
          %s696 = scalar_lea.hbm %s5, %s695
          %s698 = sshll.u32 %s684, 4
          %s699 = int_to_ptr.vmem [resolvable:$true] %s698
          %s700 = sshll.u32 %s696, 4
          %s701 = int_to_ptr.hbm [resolvable:$true] %s700
          %703 = dma.vmem_to_hbm [thread:$0]  %s699, 160, %s701, %s681
        $region68: #{tpu_custom_call.1} parent=39 // pred_fallthru
          _
        // Predicated region
        $region69: #{tpu_custom_call.1} parent=39 // pred_check
          %p704 = pneg %p211
        $region70: #{tpu_custom_call.1} parent=39 // pred_check_branch
          %706 = sbr.rel (%p704) target = $region72
        $region71: #{tpu_custom_call.1} parent=39 // pred_region
          _
        $region72: #{tpu_custom_call.1} parent=39 // pred_fallthru
          _
      $region40: #{tpu_custom_call.1} parent=5 // pred_fallthru
        _
      %p707 = scmp.le.s32.totalorder 2, %s22
      // Predicated region
      $region73: #{tpu_custom_call.1} parent=5 // pred_check
        %p708 = pneg %p707
      $region74: #{tpu_custom_call.1} parent=5 // pred_check_branch
        %710 = sbr.rel (%p708) target = $region76
      $region75: #{tpu_custom_call.1} parent=5 // pred_region
        %s711 = ssub.s32 %s22, 2
        // Predicated region
        $region77: #{tpu_custom_call.1} parent=75 // pred_check
          %p712 = pneg %p191
        $region78: #{tpu_custom_call.1} parent=75 // pred_check_branch
          %714 = sbr.rel (%p712) target = $region80
        $region79: #{tpu_custom_call.1} parent=75 // pred_region
          %s715 = sand.u32 %s176, 1
          %s716 = scalar_lea.sflag [#allocation4], %s715
          %s717 = sand.u32 %s176, 1
          %s718 = smul.addr %s717, 10
          %s719 = scalar_lea.vmem [#allocation8], %s718
          %721 = dma.done %s716, 160
        $region80: #{tpu_custom_call.1} parent=75 // pred_fallthru
          _
        // Predicated region
        $region81: #{tpu_custom_call.1} parent=75 // pred_check
          %p722 = pneg %p217
        $region82: #{tpu_custom_call.1} parent=75 // pred_check_branch
          %724 = sbr.rel (%p722) target = $region84
        $region83: #{tpu_custom_call.1} parent=75 // pred_region
          %p725 = scmp.lt.s32.totalorder %s33, 1
          %s726 = scalar_select %p725, %s33, 1
          %s727 = scalar_lea.vmem %s6, %s726
        $region84: #{tpu_custom_call.1} parent=75 // pred_fallthru
          _
      $region76: #{tpu_custom_call.1} parent=5 // pred_fallthru
        _
    $region6: #{tpu_custom_call.1} parent=1 // loop_footer
      %s26 = sadd.s32 1, %s22
    $region7: #{tpu_custom_call.1} parent=1 // loop_footer_branch
      %21 = sbr.rel target = $region3
    $region8: #{tpu_custom_call.1} parent=1 // loop_exit
      _
    %728 = vsyncpa [#allocation3], 1
    %s729 = scalar_lea.sflag [#allocation3], 1
    %730 = vsyncpa %s729, 1
    %731 = vsyncpa [#allocation6], 1
    %s732 = scalar_lea.sflag [#allocation6], 1
    %733 = vsyncpa %s732, 1
    %734 = vsyncpa [#allocation4], 1
    %s735 = scalar_lea.sflag [#allocation4], 1
    %736 = vsyncpa %s735, 1

</llo_original>
